<compile_context>
chip_gen: v7x
topology: tpu7x:2x2x1
jax: 0.10.0
libtpu: 0.0.40
codegen_flags: <defaults>
</compile_context>

<pallas_src>
import math
import functools

import numpy as np
import jax
import jax.numpy as jnp
from jax import lax
from jax.experimental import pallas as pl
from jax.experimental.pallas import tpu as pltpu


def _round_up(x, m):
    return ((x + m - 1) // m) * m


# ----------------------------------------------------------------------------
# value_proj: row-tiled bf16 matmul over the level-padded input (lane-dense out)
# ----------------------------------------------------------------------------
def _value_proj_kernel(x_ref, w_ref, b_ref, o_ref):
    y = jnp.dot(x_ref[0], w_ref[...], preferred_element_type=jnp.float32)
    o_ref[0] = (y + b_ref[...]).astype(o_ref.dtype)


def value_proj(x_bf16, w_bf16, b_f32, *, tile_m):
    N, M, K = x_bf16.shape
    d_out = w_bf16.shape[1]
    return pl.pallas_call(
        _value_proj_kernel,
        out_shape=jax.ShapeDtypeStruct((N, M, d_out), jnp.bfloat16),
        grid=(N, M // tile_m),
        in_specs=[
            pl.BlockSpec((1, tile_m, K), lambda n, m: (n, m, 0)),
            pl.BlockSpec((K, d_out), lambda n, m: (0, 0)),
            pl.BlockSpec((1, d_out), lambda n, m: (0, 0)),
        ],
        out_specs=pl.BlockSpec((1, tile_m, d_out), lambda n, m: (n, m, 0)),
        compiler_params=pltpu.CompilerParams(
            dimension_semantics=("parallel", "parallel")),
    )(x_bf16, w_bf16, b_f32.reshape(1, d_out))


# ----------------------------------------------------------------------------
# Core deformable-attention kernel (fused offset/weight projections, fused
# output projection, fori_loop chunk loop with VMEM scratch accumulators).
# ----------------------------------------------------------------------------
def _msda_core_kernel(coords_ref, value_ref, q_ref, ref_ref,
                      woff_ref, boff_ref, wa_ref, ba_ref, wo_ref, bo_ref,
                      out_ref, head_acc, out_acc,
                      *, spatial_shapes, level_starts_pad, n_chunks,
                      n_heads, n_levels, n_points, chunk, head_dim, tent_bf16):
    out_acc[...] = jnp.zeros_like(out_acc)
    q = q_ref[0]                                    # (TLq, d_model) f32
    refp = ref_ref[0]                               # (TLq, 2L)      f32
    P = n_points
    Dh = head_dim
    tdt = jnp.bfloat16 if tent_bf16 else jnp.float32

    for h in range(n_heads):
        # fused sampling_offsets / attention_weights projections (tiny f32 MXU)
        off = jnp.dot(q, woff_ref[h], preferred_element_type=jnp.float32) + boff_ref[h]
        logits = jnp.dot(q, wa_ref[h], preferred_element_type=jnp.float32) + ba_ref[h]
        m = jnp.max(logits, axis=-1, keepdims=True)
        e = jnp.exp(logits - m)
        aw = e / jnp.sum(e, axis=-1, keepdims=True)   # exact softmax (off crit path)

        head_acc[...] = jnp.zeros_like(head_acc)
        for l in range(n_levels):
            Hl, Wl = spatial_shapes[l]
            lstart = level_starts_pad[l]
            rx = refp[:, 2 * l:2 * l + 1]
            ry = refp[:, 2 * l + 1:2 * l + 2]
            sx, sy, ws = [], [], []
            for p in range(P):
                base = 2 * (l * P + p)
                # (ref + off/[W,H]) * [W,H] - 0.5  ==  ref*[W,H] + off - 0.5
                sx.append(rx * float(Wl) + off[:, base:base + 1] - 0.5)
                sy.append(ry * float(Hl) + off[:, base + 1:base + 2] - 0.5)
                ws.append(aw[:, l * P + p:l * P + p + 1].astype(tdt))

            def chunk_body(c, carry):
                start = pl.multiple_of(lstart + c * chunk, 128)
                xrow = coords_ref[0:1, pl.ds(start, chunk)]      # (1, chunk) f32
                yrow = coords_ref[1:2, pl.ds(start, chunk)]
                a = None
                for p in range(P):
                    # coordinate subtraction stays f32; clamped tents may be bf16
                    wx = jnp.maximum(1.0 - jnp.abs(sx[p] - xrow), 0.0).astype(tdt)
                    wy = jnp.maximum(1.0 - jnp.abs(sy[p] - yrow), 0.0).astype(tdt)
                    contrib = ws[p] * (wx * wy)
                    a = contrib if a is None else a + contrib
                vchunk = value_ref[0, pl.ds(start, chunk), h * Dh:(h + 1) * Dh]
                head_acc[...] += jnp.dot(a.astype(vchunk.dtype), vchunk,
                                         preferred_element_type=jnp.float32)
                return carry

            lax.fori_loop(0, n_chunks[l], chunk_body, 0)

        # fused output projection for this head (lane-dense d_model accumulator)
        out_acc[...] += jnp.dot(head_acc[...].astype(wo_ref.dtype), wo_ref[h],
                                preferred_element_type=jnp.float32)

    out_ref[0] = (out_acc[...] + bo_ref[...]).astype(out_ref.dtype)


# ----------------------------------------------------------------------------
# Chip-aware sizing helpers.
# ----------------------------------------------------------------------------
def _chip_config():
    kind = ""
    try:
        kind = jax.devices()[0].device_kind.lower()
    except Exception:
        pass
    is_v7 = ("v7" in kind) or ("7x" in kind)
    is_v6 = "v6" in kind
    phys = None
    try:
        phys = int(pltpu.get_tpu_info().vmem_capacity_bytes)
    except Exception:
        phys = None
    if phys is None or phys <= 0:
        phys = (64 if is_v7 else 128) * 1024 * 1024
    cap = min(int(0.75 * phys), 100 * 1024 * 1024)   # headroom: never the full VMEM
    tent_bf16 = bool(is_v6 or is_v7)                 # v5e/v4 have no bf16 VALU
    chunk_target = 1024 if is_v7 else (4096 if is_v6 else 2048)
    tlq_target = 256 if is_v7 else 512
    return cap, tent_bf16, chunk_target, tlq_target


def _pad_levels(spatial_shapes, chunk):
    starts, nchunks, pos = [], [], 0
    for (h, w) in spatial_shapes:
        nc = max(1, -(-(h * w) // chunk))
        starts.append(pos)
        nchunks.append(nc)
        pos += nc * chunk
    return starts, nchunks, pos


def _fit_tiles(spatial_shapes, d_model, Lq, n_heads, n_levels, n_points,
               cap_bytes, tent_bf16, chunk_target, tlq_target):
    max_hw = max(h * w for (h, w) in spatial_shapes)
    chunk = 128
    while chunk < chunk_target and chunk < max_hw:
        chunk *= 2
    tlq = min(tlq_target, _round_up(Lq, 8))
    tbytes = 2 if tent_bf16 else 4
    LP = n_levels * n_points

    def est(ck, tq):
        _, _, lin_pad = _pad_levels(spatial_shapes, ck)
        return (2 * lin_pad * d_model * 2                      # resident value (bf16, 2 bufs)
                + 2 * 2 * lin_pad * 4                          # coordinate table
                + 4 * tq * d_model * 4                         # query + output blocks
                + 6 * tq * ck * tbytes                         # tent temporaries
                + tq * d_model * 4 + tq * (d_model // n_heads) * 4   # scratch accs
                + n_heads * d_model * 3 * LP * 4 * 2           # fused-proj weights
                + (4 << 20))                                   # slack

    while est(chunk, tlq) * 1.25 > cap_bytes and (chunk > 512 or tlq > 256):
        if chunk > 512:
            chunk //= 2
        else:
            tlq //= 2
    starts, nchunks, lin_pad = _pad_levels(spatial_shapes, chunk)
    vmem_limit = int(min(cap_bytes, max(32 << 20, 1.25 * est(chunk, tlq))))
    return chunk, tlq, starts, nchunks, lin_pad, vmem_limit


# ----------------------------------------------------------------------------
# Module-level forward.
# ----------------------------------------------------------------------------
def msdeform_attn_forward(params, query, reference_points, input_flatten,
                          input_spatial_shapes, input_level_start_index,
                          input_padding_mask=None,
                          *, n_heads, n_levels, n_points):
    N, Lq, d_model = query.shape
    _, Lin, _ = input_flatten.shape
    Dh = d_model // n_heads
    spatial_shapes = [(int(h), int(w)) for (h, w) in input_spatial_shapes]
    level_starts = [int(s) for s in input_level_start_index]
    assert sum(h * w for (h, w) in spatial_shapes) == Lin
    # TODO(synk): reference_points with last dim == 4 (box form) not implemented.
    assert reference_points.shape[-1] == 2

    cap_bytes, tent_bf16, chunk_target, tlq_target = _chip_config()
    chunk, tlq, starts_pad, n_chunks, Lin_pad, vmem_limit = _fit_tiles(
        spatial_shapes, d_model, Lq, n_heads, n_levels, n_points,
        cap_bytes, tent_bf16, chunk_target, tlq_target)

    # --- pad each level to a chunk multiple; padded input + (x, y) coord table ---
    pieces, xs, ys = [], [], []
    for l, (Hl, Wl) in enumerate(spatial_shapes):
        s = level_starts[l]
        hw = Hl * Wl
        padn = n_chunks[l] * chunk - hw
        piece = input_flatten[:, s:s + hw]
        if padn:
            piece = jnp.pad(piece, ((0, 0), (0, padn), (0, 0)))
        pieces.append(piece)
        x = np.tile(np.arange(Wl, dtype=np.float32), Hl)
        y = np.repeat(np.arange(Hl, dtype=np.float32), Wl)
        if padn:
            x = np.concatenate([x, np.full(padn, -1e6, np.float32)])
            y = np.concatenate([y, np.full(padn, -1e6, np.float32)])
        xs.append(x)
        ys.append(y)
    x_pad = jnp.concatenate(pieces, axis=1).astype(jnp.bfloat16)     # (N, Lin_pad, d)
    coords = jnp.asarray(np.stack([np.concatenate(xs), np.concatenate(ys)], 0))

    # --- value projection (bf16 input pre-cast: halves the dominant HBM read) ---
    value = value_proj(x_pad, params["Wv"].astype(jnp.bfloat16), params["bv"],
                       tile_m=min(512, chunk))
    if input_padding_mask is not None:
        mpieces = []
        for l, (Hl, Wl) in enumerate(spatial_shapes):
            s = level_starts[l]
            hw = Hl * Wl
            padn = n_chunks[l] * chunk - hw
            mp = input_padding_mask[:, s:s + hw]
            if padn:
                mp = jnp.pad(mp, ((0, 0), (0, padn)))
            mpieces.append(mp)
        mask_pad = jnp.concatenate(mpieces, axis=1)
        value = jnp.where(mask_pad[..., None], jnp.zeros((), value.dtype), value)

    # --- pad queries / reference points along Lq to a multiple of the q tile ---
    Lq_pad = _round_up(Lq, tlq)
    qpad = Lq_pad - Lq
    q_pad = jnp.pad(query, ((0, 0), (0, qpad), (0, 0))) if qpad else query
    refp = reference_points.reshape(N, Lq, 2 * n_levels)
    if qpad:
        refp = jnp.pad(refp, ((0, 0), (0, qpad), (0, 0)))

    # --- head-major weight blocks for the fused projections (tiny) ---
    LP = n_levels * n_points
    woff = jnp.transpose(params["Woff"].reshape(d_model, n_heads, 2 * LP), (1, 0, 2))
    boff = params["boff"].reshape(n_heads, 1, 2 * LP)
    wa = jnp.transpose(params["Wa"].reshape(d_model, n_heads, LP), (1, 0, 2))
    ba = params["ba"].reshape(n_heads, 1, LP)
    wo = params["Wo"].reshape(n_heads, Dh, d_model).astype(jnp.bfloat16)
    bo = params["bo"].reshape(1, d_model)

    cost = pl.CostEstimate(
        flops=int(2 * N * n_heads * Lq_pad * Lin_pad * Dh
                  + 8 * n_points * N * n_heads * Lq_pad * Lin_pad
                  + 2 * N * n_heads * Lq_pad * Dh * d_model),
        transcendentals=int(N * n_heads * Lq_pad * LP),
        bytes_accessed=int(N * Lin_pad * d_model * 2
                           + 2 * N * Lq_pad * d_model * 4
                           + N * Lq_pad * 2 * n_levels * 4
                           + 2 * Lin_pad * 4))

    out_pad = pl.pallas_call(
        functools.partial(
            _msda_core_kernel,
            spatial_shapes=tuple(spatial_shapes),
            level_starts_pad=tuple(starts_pad),
            n_chunks=tuple(n_chunks),
            n_heads=n_heads, n_levels=n_levels, n_points=n_points,
            chunk=chunk, head_dim=Dh, tent_bf16=tent_bf16),
        out_shape=jax.ShapeDtypeStruct((N, Lq_pad, d_model), jnp.float32),
        grid=(N, Lq_pad // tlq),
        in_specs=[
            pl.BlockSpec((2, Lin_pad), lambda n, q: (0, 0)),
            pl.BlockSpec((1, Lin_pad, d_model), lambda n, q: (n, 0, 0)),
            pl.BlockSpec((1, tlq, d_model), lambda n, q: (n, q, 0)),
            pl.BlockSpec((1, tlq, 2 * n_levels), lambda n, q: (n, q, 0)),
            pl.BlockSpec((n_heads, d_model, 2 * LP), lambda n, q: (0, 0, 0)),
            pl.BlockSpec((n_heads, 1, 2 * LP), lambda n, q: (0, 0, 0)),
            pl.BlockSpec((n_heads, d_model, LP), lambda n, q: (0, 0, 0)),
            pl.BlockSpec((n_heads, 1, LP), lambda n, q: (0, 0, 0)),
            pl.BlockSpec((n_heads, Dh, d_model), lambda n, q: (0, 0, 0)),
            pl.BlockSpec((1, d_model), lambda n, q: (0, 0)),
        ],
        out_specs=pl.BlockSpec((1, tlq, d_model), lambda n, q: (n, q, 0)),
        scratch_shapes=[pltpu.VMEM((tlq, Dh), jnp.float32),
                        pltpu.VMEM((tlq, d_model), jnp.float32)],
        compiler_params=pltpu.CompilerParams(
            dimension_semantics=("parallel", "parallel"),
            vmem_limit_bytes=vmem_limit),
        cost_estimate=cost,
    )(coords, value, q_pad, refp, woff, boff, wa, ba, wo, bo)

    return out_pad[:, :Lq] if qpad else out_pad


# ----------------------------------------------------------------------------
# Pure-JAX reference (mirrors ms_deform_attn_core_pytorch) for verification.
# ----------------------------------------------------------------------------
def ref_forward(params, query, reference_points, input_flatten,
                spatial_shapes, level_starts, *, n_heads, n_levels, n_points):
    hp = jax.lax.Precision.HIGHEST
    N, Lq, d = query.shape
    _, Lin, _ = input_flatten.shape
    Dh = d // n_heads
    value = (jnp.dot(input_flatten, params["Wv"], precision=hp) + params["bv"]
             ).reshape(N, Lin, n_heads, Dh)
    off = (jnp.dot(query, params["Woff"], precision=hp) + params["boff"]
           ).reshape(N, Lq, n_heads, n_levels, n_points, 2)
    logits = (jnp.dot(query, params["Wa"], precision=hp) + params["ba"]
              ).reshape(N, Lq, n_heads, n_levels * n_points)
    aw = jax.nn.softmax(logits, axis=-1).reshape(N, Lq, n_heads, n_levels, n_points)
    norm = jnp.array([[w, h] for (h, w) in spatial_shapes], jnp.float32)
    loc = reference_points[:, :, None, :, None, :] + off / norm[None, None, None, :, None, :]

    out_heads = jnp.zeros((N, Lq, n_heads, Dh), jnp.float32)
    n_idx = jnp.arange(N)[:, None, None, None]
    h_idx = jnp.arange(n_heads)[None, None, :, None]
    for l, (Hh, W) in enumerate(spatial_shapes):
        s = level_starts[l]
        v_l = value[:, s:s + Hh * W].reshape(N, Hh, W, n_heads, Dh)
        loc_l = loc[:, :, :, l]                         # (N, Lq, H, P, 2)
        x = loc_l[..., 0] * W - 0.5
        y = loc_l[..., 1] * Hh - 0.5
        x0 = jnp.floor(x); y0 = jnp.floor(y)
        fx = x - x0; fy = y - y0
        x0i = x0.astype(jnp.int32); y0i = y0.astype(jnp.int32)
        samp = jnp.zeros((N, Lq, n_heads, n_points, Dh), jnp.float32)
        for dy, dx, wgt in ((0, 0, (1 - fx) * (1 - fy)), (0, 1, fx * (1 - fy)),
                            (1, 0, (1 - fx) * fy), (1, 1, fx * fy)):
            xi = x0i + dx; yi = y0i + dy
            valid = ((xi >= 0) & (xi < W) & (yi >= 0) & (yi < Hh)).astype(jnp.float32)
            xi_c = jnp.clip(xi, 0, W - 1); yi_c = jnp.clip(yi, 0, Hh - 1)
            g = v_l[n_idx, yi_c, xi_c, h_idx]           # (N, Lq, H, P, Dh)
            samp = samp + g * (wgt * valid)[..., None]
        out_heads = out_heads + jnp.sum(samp * aw[:, :, :, l, :, None], axis=3)
    out = out_heads.reshape(N, Lq, d)
    return jnp.dot(out, params["Wo"], precision=hp) + params["bo"]


# ----------------------------------------------------------------------------
# Deterministic parameter init (shapes per MSDeformAttn.__init__; grid-direction
# bias for sampling_offsets as in resetparameters; small random weights where
# torch init is zero so the kernel paths are non-degenerate).
# ----------------------------------------------------------------------------
def init_params(key, d_model, n_heads, n_levels, n_points):
    k1, k2, k3, k4 = jax.random.split(key, 4)

    def xavier(k, fan_in, fan_out, scale=1.0):
        bound = math.sqrt(6.0 / (fan_in + fan_out)) * scale
        return jax.random.uniform(k, (fan_in, fan_out), jnp.float32, -bound, bound)

    Wv = xavier(k1, d_model, d_model)
    bv = jnp.zeros((d_model,), jnp.float32)
    Wo = xavier(k2, d_model, d_model)
    bo = jnp.zeros((d_model,), jnp.float32)
    Wa = xavier(k3, d_model, n_heads * n_levels * n_points, scale=0.5)
    ba = jnp.zeros((n_heads * n_levels * n_points,), jnp.float32)
    Woff = xavier(k4, d_model, n_heads * n_levels * n_points * 2, scale=0.2)

    thetas = np.arange(n_heads, dtype=np.float64) * (2.0 * math.pi / n_heads)
    grid = np.stack([np.cos(thetas), np.sin(thetas)], -1)
    grid = grid / np.abs(grid).max(-1, keepdims=True)
    grid = np.tile(grid.reshape(n_heads, 1, 1, 2), (1, n_levels, n_points, 1))
    for i in range(n_points):
        grid[:, :, i, :] *= (i + 1)
    boff = jnp.asarray(grid.reshape(-1), jnp.float32)

    return dict(Wv=Wv, bv=bv, Wo=Wo, bo=bo, Wa=Wa, ba=ba, Woff=Woff, boff=boff)


if __name__ == "__main__":
    d_model, n_heads, n_levels, n_points = 32, 4, 2, 2
    N, Lq = 2, 8
    spatial_shapes = [(8, 8), (4, 4)]
    level_starts = [0, 64]
    Lin = sum(h * w for (h, w) in spatial_shapes)

    key = jax.random.PRNGKey(0)
    kp, kq, kf, kr = jax.random.split(key, 4)
    params = init_params(kp, d_model, n_heads, n_levels, n_points)

    query = jax.random.normal(kq, (N, Lq, d_model), jnp.float32)
    input_flatten = jax.random.normal(kf, (N, Lin, d_model), jnp.float32)
    reference_points = jax.random.uniform(kr, (N, Lq, n_levels, 2), jnp.float32)

    out = msdeform_attn_forward(
        params, query, reference_points, input_flatten,
        spatial_shapes, level_starts, input_padding_mask=None,
        n_heads=n_heads, n_levels=n_levels, n_points=n_points)
    out = jax.block_until_ready(out)

    ref = ref_forward(params, query, reference_points, input_flatten,
                      spatial_shapes, level_starts,
                      n_heads=n_heads, n_levels=n_levels, n_points=n_points)
    ref = jax.block_until_ready(ref)

    assert out.shape == (N, Lq, d_model)
    err = float(jnp.max(jnp.abs(out - ref)))
    # bf16 value storage / MXU inputs (and bf16 tent math on v6e/v7x) vs f32 ref
    assert err < 1e-1, f"max abs error {err}"
    print("KERNEL_OK")
</pallas_src>

<mosaic_0001>
module attributes {stable_mosaic.version = 11 : i64} {
  func.func @_value_proj_kernel(%arg0: i32, %arg1: i32, %arg2: memref<1x128x32xbf16, #tpu.memory_space<vmem>>, %arg3: memref<32x32xbf16, #tpu.memory_space<vmem>>, %arg4: memref<1x32xf32, #tpu.memory_space<vmem>>, %arg5: memref<1x128x32xbf16, #tpu.memory_space<vmem>>) attributes {dimension_semantics = [#tpu.dimension_semantics<parallel>, #tpu.dimension_semantics<parallel>], iteration_bounds = array<i64: 2, 2>, scalar_prefetch = 0 : i64, scratch_operands = 0 : i64, tpu.core_type = #tpu.core_type<tc>, window_params = [{transform_indices = @transform_0, window_bounds = array<i64: 1, 128, 32>}, {pipeline_mode = #tpu.pipeline_mode<synchronous>, transform_indices = @transform_1, window_bounds = array<i64: 32, 32>}, {pipeline_mode = #tpu.pipeline_mode<synchronous>, transform_indices = @transform_2, window_bounds = array<i64: 1, 32>}, {transform_indices = @transform_3, window_bounds = array<i64: 1, 128, 32>}]} {
    %c0 = arith.constant 0 : index
    %c0_0 = arith.constant 0 : index
    %c0_1 = arith.constant 0 : index
    %0 = vector.load %arg2[%c0, %c0_0, %c0_1] : memref<1x128x32xbf16, #tpu.memory_space<vmem>>, vector<1x128x32xbf16>
    %1 = vector.shape_cast %0 : vector<1x128x32xbf16> to vector<128x32xbf16>
    %c0_2 = arith.constant 0 : index
    %c0_3 = arith.constant 0 : index
    %2 = vector.load %arg3[%c0_2, %c0_3] : memref<32x32xbf16, #tpu.memory_space<vmem>>, vector<32x32xbf16>
    %cst = arith.constant dense<0.000000e+00> : vector<128x32xf32>
    %3 = tpu.matmul %1, %2, %cst {dimension_numbers = #tpu.dot_dimension_numbers<[1], [0], [0], [1], [0, 0, 1, 1], [], []>} : vector<128x32xbf16>, vector<32x32xbf16>, vector<128x32xf32> -> vector<128x32xf32>
    %c0_4 = arith.constant 0 : index
    %c0_5 = arith.constant 0 : index
    %4 = vector.load %arg4[%c0_4, %c0_5] : memref<1x32xf32, #tpu.memory_space<vmem>>, vector<1x32xf32>
    %5 = vector.broadcast %4 : vector<1x32xf32> to vector<128x32xf32>
    %6 = arith.addf %3, %5 : vector<128x32xf32>
    %7 = arith.truncf %6 : vector<128x32xf32> to vector<128x32xbf16>
    %c0_6 = arith.constant 0 : index
    %c0_7 = arith.constant 0 : index
    %c0_8 = arith.constant 0 : index
    %8 = vector.load %arg5[%c0_6, %c0_7, %c0_8] : memref<1x128x32xbf16, #tpu.memory_space<vmem>>, vector<1x128x32xbf16>
    %9 = vector.shape_cast %8 : vector<1x128x32xbf16> to vector<128x32xbf16>
    %10 = vector.shape_cast %7 : vector<128x32xbf16> to vector<1x128x32xbf16>
    tpu.vector_store %arg5[%c0_6, %c0_7, %c0_8], %10 {strides = array<i32>} : memref<1x128x32xbf16, #tpu.memory_space<vmem>>, vector<1x128x32xbf16>,
    return
  }
  func.func @transform_0(%arg0: i32, %arg1: i32) -> (i32, i32, i32) {
    %c0_i32 = arith.constant 0 : i32
    %c0_i32_0 = arith.constant 0 : i32
    return %arg0, %arg1, %c0_i32 : i32, i32, i32
  }
  func.func @transform_1(%arg0: i32, %arg1: i32) -> (i32, i32) {
    %c0_i32 = arith.constant 0 : i32
    %c0_i32_0 = arith.constant 0 : i32
    %c0_i32_1 = arith.constant 0 : i32
    return %c0_i32, %c0_i32_0 : i32, i32
  }
  func.func @transform_2(%arg0: i32, %arg1: i32) -> (i32, i32) {
    %c0_i32 = arith.constant 0 : i32
    %c0_i32_0 = arith.constant 0 : i32
    %c0_i32_1 = arith.constant 0 : i32
    return %c0_i32, %c0_i32_0 : i32, i32
  }
  func.func @transform_3(%arg0: i32, %arg1: i32) -> (i32, i32, i32) {
    %c0_i32 = arith.constant 0 : i32
    %c0_i32_0 = arith.constant 0 : i32
    return %arg0, %arg1, %c0_i32 : i32, i32, i32
  }
}

</mosaic_0001>

<llo_original>
// kernel: tpu_custom_call.1
$region0: #{tpu_custom_call.1}
  #allocation0 [shape = 'u32[]', space=smem, size = 0x4, offset = 0x4, fixed_abs, tag = 'smem constant byte address 0x4 - core index']
  #allocation1 [shape = 'u32[144,128]{1,0:T(1,128)}', space=vmem, size = 0x12000, scoped, tag = 'internal scratch']
  %s0 = inlined_call_operand.vmem [shape: bf16[2,256,32], index: 0, kind: input, shape index: {}]
  %s1 = inlined_call_operand.vmem [shape: bf16[32,32], index: 1, kind: input, shape index: {}]
  %s2 = inlined_call_operand.vmem [shape: f32[1,32], index: 2, kind: input, shape index: {}]
  %s3 = inlined_call_operand.vmem [shape: bf16[2,256,32], index: 3, kind: output, shape index: {}]
  %s4 = sld [smem:[#allocation0]]
  $region45: #{tpu_custom_call.1} parent=0
    _
  %s6 = ssub.s32 1, %s4
  %s7 = scalar_select 0, %s6, %s4
  loop: start=0, step=1, limit=6
  $region2: #{tpu_custom_call.1} parent=0 // loop_pre_header
    _
  $region3: #{tpu_custom_call.1} parent=0 // loop_header
    %s9 = sphi 0, %s13
    %p10 = scmp.ge.s32.totalorder %s9, 6
    %s16 = sphi 0, %s28
    %s17 = sphi 0, %s24
    %s18 = sphi 0, %s16
    %s19 = sphi 0, %s17
    %s20 = sphi 0, %s18
    %s21 = sphi 0, %s19
    %s33 = sphi 0, %s35
    %s36 = sphi 0, %s33
    %s37 = sphi 0, %s36
    %s53 = sphi 0, %s37
    %s57 = sphi 0, %s57
    %s59 = sphi 0, %s57
    %s60 = sphi 0, %s59
    %s74 = sphi 0, %s60
    %s78 = sphi 0, %s78
    %s80 = sphi 0, %s78
    %s81 = sphi 0, %s80
    %s95 = sphi 0, %s81
    %s103 = sphi 0, %s105
    %s106 = sphi 0, %s103
    %s107 = sphi 0, %s106
    %s123 = sphi 0, %s107
  $region4: #{tpu_custom_call.1} parent=0 // loop_header_branch
    %12 = sbr.rel (%p10) target = $region8
  $region5: #{tpu_custom_call.1} parent=0 // loop_body
    %s14 = ssub.s32 %s9, 1
    %s15 = ssub.s32 %s9, 2
    %s22 = sadd.s32 1, %s17
    %p23 = scmp.ge.s32.totalorder %s22, 2
    %s24 = scalar_select %p23, 0, %s22
    %s25 = sadd.s32 1, %s16
    %s26 = scalar_select %p23, %s25, %s16
    %p27 = scmp.ge.s32.totalorder %s26, 2
    %s28 = scalar_select %p27, 0, %s26
    %s29 = ssub.s32 %s16, %s28
    %s30 = ssub.s32 %s17, %s24
    %s31 = sor.u32 %s29, %s30
    %p32 = scmp.eq.s32.totalorder %s31, 0
    %s34 = sadd.s32 %s33, 1
    %s35 = scalar_select %p32, %s33, %s34
    %p38 = pneg %p32
    %p39 = scmp.eq.s32.totalorder %s9, 3
    %p40 = por %p38, %p39
    %p41 = scmp.ne.s32.totalorder %s33, %s36
    %p42 = scmp.eq.s32.totalorder %s9, 0
    %p43 = por %p41, %p42
    %p44 = scmp.ne.s32.totalorder %s33, %s36
    %p45 = scmp.eq.s32.totalorder %s14, 3
    %p46 = por %p44, %p45
    %p47 = scmp.ne.s32.totalorder %s36, %s37
    %p48 = scmp.eq.s32.totalorder %s14, 0
    %p49 = por %p47, %p48
    %p50 = scmp.ne.s32.totalorder %s36, %s37
    %p51 = scmp.eq.s32.totalorder %s15, 3
    %p52 = por %p50, %p51
    %p54 = scmp.ne.s32.totalorder %s37, %s53
    %p55 = scmp.eq.s32.totalorder %s15, 0
    %p56 = por %p54, %p55
    %s58 = sadd.s32 %s57, 1
    %p61 = scmp.eq.s32.totalorder %s9, 3
    %p62 = scmp.ne.s32.totalorder %s57, %s59
    %p63 = scmp.eq.s32.totalorder %s9, 0
    %p64 = por %p62, %p63
    %p65 = scmp.ne.s32.totalorder %s57, %s59
    %p66 = scmp.eq.s32.totalorder %s14, 3
    %p67 = por %p65, %p66
    %p68 = scmp.ne.s32.totalorder %s59, %s60
    %p69 = scmp.eq.s32.totalorder %s14, 0
    %p70 = por %p68, %p69
    %p71 = scmp.ne.s32.totalorder %s59, %s60
    %p72 = scmp.eq.s32.totalorder %s15, 3
    %p73 = por %p71, %p72
    %p75 = scmp.ne.s32.totalorder %s60, %s74
    %p76 = scmp.eq.s32.totalorder %s15, 0
    %p77 = por %p75, %p76
    %s79 = sadd.s32 %s78, 1
    %p82 = scmp.eq.s32.totalorder %s9, 3
    %p83 = scmp.ne.s32.totalorder %s78, %s80
    %p84 = scmp.eq.s32.totalorder %s9, 0
    %p85 = por %p83, %p84
    %p86 = scmp.ne.s32.totalorder %s78, %s80
    %p87 = scmp.eq.s32.totalorder %s14, 3
    %p88 = por %p86, %p87
    %p89 = scmp.ne.s32.totalorder %s80, %s81
    %p90 = scmp.eq.s32.totalorder %s14, 0
    %p91 = por %p89, %p90
    %p92 = scmp.ne.s32.totalorder %s80, %s81
    %p93 = scmp.eq.s32.totalorder %s15, 3
    %p94 = por %p92, %p93
    %p96 = scmp.ne.s32.totalorder %s81, %s95
    %p97 = scmp.eq.s32.totalorder %s15, 0
    %p98 = por %p96, %p97
    %s99 = ssub.s32 %s16, %s28
    %s100 = ssub.s32 %s17, %s24
    %s101 = sor.u32 %s99, %s100
    %p102 = scmp.eq.s32.totalorder %s101, 0
    %s104 = sadd.s32 %s103, 1
    %s105 = scalar_select %p102, %s103, %s104
    %p108 = pneg %p102
    %p109 = scmp.eq.s32.totalorder %s9, 3
    %p110 = por %p108, %p109
    %p111 = scmp.ne.s32.totalorder %s103, %s106
    %p112 = scmp.eq.s32.totalorder %s9, 0
    %p113 = por %p111, %p112
    %p114 = scmp.ne.s32.totalorder %s103, %s106
    %p115 = scmp.eq.s32.totalorder %s14, 3
    %p116 = por %p114, %p115
    %p117 = scmp.ne.s32.totalorder %s106, %s107
    %p118 = scmp.eq.s32.totalorder %s14, 0
    %p119 = por %p117, %p118
    %p120 = scmp.ne.s32.totalorder %s106, %s107
    %p121 = scmp.eq.s32.totalorder %s15, 3
    %p122 = por %p120, %p121
    %p124 = scmp.ne.s32.totalorder %s107, %s123
    %p125 = scmp.eq.s32.totalorder %s15, 0
    %p126 = por %p124, %p125
    %p127 = scmp.le.s32.totalorder 1, %s9
    %p128 = scmp.lt.s32.totalorder %s9, 5
    %p129 = pnand %p127, %p128
    %p130 = pneg %p129
    // Predicated region
    $region9: #{tpu_custom_call.1} parent=5 // pred_check
      _
    $region10: #{tpu_custom_call.1} parent=5 // pred_check_branch
      %132 = sbr.rel (%p129) target = $region12
    $region11: #{tpu_custom_call.1} parent=5 // pred_region
      %s133 = ssub.s32 %s9, 1
      // Predicated region
      $region13: #{tpu_custom_call.1} parent=11 // pred_check
        %p134 = pneg %p70
      $region14: #{tpu_custom_call.1} parent=11 // pred_check_branch
        %136 = sbr.rel (%p134) target = $region16
      $region15: #{tpu_custom_call.1} parent=11 // pred_region
        _
      $region16: #{tpu_custom_call.1} parent=11 // pred_fallthru
        _
      // Predicated region
      $region17: #{tpu_custom_call.1} parent=11 // pred_check
        %p137 = pneg %p91
      $region18: #{tpu_custom_call.1} parent=11 // pred_check_branch
        %139 = sbr.rel (%p137) target = $region20
      $region19: #{tpu_custom_call.1} parent=11 // pred_region
        _
      $region20: #{tpu_custom_call.1} parent=11 // pred_fallthru
        _
    $region12: #{tpu_custom_call.1} parent=5 // pred_fallthru
      _
    %p140 = scmp.lt.s32.totalorder %s9, 4
    // Predicated region
    $region21: #{tpu_custom_call.1} parent=5 // pred_check
      %p141 = pneg %p140
    $region22: #{tpu_custom_call.1} parent=5 // pred_check_branch
      %143 = sbr.rel (%p141) target = $region24
    $region23: #{tpu_custom_call.1} parent=5 // pred_region
      // Predicated region
      $region25: #{tpu_custom_call.1} parent=23 // pred_check
        %p144 = pneg %p43
      $region26: #{tpu_custom_call.1} parent=23 // pred_check_branch
        %146 = sbr.rel (%p144) target = $region28
      $region27: #{tpu_custom_call.1} parent=23 // pred_region
        %s147 = smul.u32 16, %s17
        %p148 = scmp.lt.s32.totalorder %s16, 1
        %s149 = scalar_select %p148, %s16, 1
        %p150 = scmp.lt.s32.totalorder %s147, 31
        %s151 = scalar_select %p150, %s147, 31
        %s152 = smul.addr %s149, 32
        %s153 = sadd.s32 %s151, %s152
        %s154 = smul.addr %s153, 4
        %s155 = scalar_lea.vmem %s0, %s154
        %s156 = smul.u32 16, %s17
      $region28: #{tpu_custom_call.1} parent=23 // pred_fallthru
        _
    $region24: #{tpu_custom_call.1} parent=5 // pred_fallthru
      _
    %p157 = scmp.le.s32.totalorder 1, %s9
    %p158 = scmp.lt.s32.totalorder %s9, 5
    %p159 = pnand %p157, %p158
    %p160 = pneg %p159
    // Predicated region
    $region29: #{tpu_custom_call.1} parent=5 // pred_check
      _
    $region30: #{tpu_custom_call.1} parent=5 // pred_check_branch
      %162 = sbr.rel (%p159) target = $region32
    $region31: #{tpu_custom_call.1} parent=5 // pred_region
      %s163 = ssub.s32 %s9, 1
      %s164 = smul.u32 16, %s19
      %p165 = scmp.lt.s32.totalorder %s18, 1
      %s166 = scalar_select %p165, %s18, 1
      %p167 = scmp.lt.s32.totalorder %s164, 31
      %s168 = scalar_select %p167, %s164, 31
      %s169 = smul.addr %s166, 32
      %s170 = sadd.s32 %s168, %s169
      %s171 = smul.addr %s170, 4
      %s172 = scalar_lea.vmem %s0, %s171
      %p173 = pneg %p49
      %p174 = pneg %p46
      %p175 = pneg %p70
      %p176 = pneg %p67
      %p177 = pneg %p91
      %p178 = pneg %p88
      %p179 = pneg %p119
      %p180 = pneg %p116
      %s181 = smul.u32 16, %s19
      %p182 = scmp.lt.s32.totalorder %s18, 1
      %s183 = scalar_select %p182, %s18, 1
      %p184 = scmp.lt.s32.totalorder %s181, 31
      %s185 = scalar_select %p184, %s181, 31
      %s186 = smul.addr %s183, 32
      %s187 = sadd.s32 %s185, %s186
      %s188 = smul.addr %s187, 4
      %s189 = scalar_lea.vmem %s3, %s188
      %s190 = smul.u32 16, %s19
      %p191 = scmp.lt.s32.totalorder %s18, 1
      %s192 = scalar_select %p191, %s18, 1
      %p193 = scmp.lt.s32.totalorder %s190, 31
      %s194 = scalar_select %p193, %s190, 31
      %s195 = smul.addr %s192, 32
      %s196 = sadd.s32 %s194, %s195
      %s197 = smul.addr %s196, 4
      %s198 = scalar_lea.vmem %s0, %s197
      %s199 = smul.u32 16, %s19
      %s200 = smul.u32 16, %s19
      %p201 = scmp.lt.s32.totalorder %s18, 1
      %s202 = scalar_select %p201, %s18, 1
      %p203 = scmp.lt.s32.totalorder %s200, 31
      %s204 = scalar_select %p203, %s200, 31
      %s205 = smul.addr %s202, 32
      %s206 = sadd.s32 %s204, %s205
      %s207 = smul.addr %s206, 4
      %s208 = scalar_lea.vmem %s3, %s207
      %s209 = smul.u32 16, %s19
      %v211 = vld [vmem:[%s198] sm:$0xf]
      %v212 = vld [vmem:[%s198 + $0x4] sm:$0xf]
      %v213 = vld [vmem:[%s198 + $0x8] sm:$0xf]
      %v214 = vld [vmem:[%s198 + $0xc] sm:$0xf]
      %v215 = vld [vmem:[%s198 + $0x10] sm:$0xf]
      %v216 = vld [vmem:[%s198 + $0x14] sm:$0xf]
      %v217 = vld [vmem:[%s198 + $0x18] sm:$0xf]
      %v218 = vld [vmem:[%s198 + $0x1c] sm:$0xf]
      %v219 = vld [vmem:[%s198 + $0x20] sm:$0xf]
      %v220 = vld [vmem:[%s198 + $0x24] sm:$0xf]
      %v221 = vld [vmem:[%s198 + $0x28] sm:$0xf]
      %v222 = vld [vmem:[%s198 + $0x2c] sm:$0xf]
      %v223 = vld [vmem:[%s198 + $0x30] sm:$0xf]
      %v224 = vld [vmem:[%s198 + $0x34] sm:$0xf]
      %v225 = vld [vmem:[%s198 + $0x38] sm:$0xf]
      %v226 = vld [vmem:[%s198 + $0x3c] sm:$0xf]
      %v227 = vld [vmem:[%s1] sm:$0xf]
      %v228 = vld [vmem:[%s1 + $0x4] sm:$0xf]
      %v229 = vld [vmem:[%s1 + $0x8] sm:$0xf]
      %v230 = vld [vmem:[%s1 + $0xc] sm:$0xf]
      %v231 = vld [vmem:[%s2] sm:$0x1]
      %v233 = vlaneseq
      %v234 = vshrl.u32 %v233, 7
      %v235 = vsub.s32 0, %v234
      %v236 = vrot.slane %v231, %v235
      %v254 = vunpack.c.l.b16 %v211
      %v255 = vunpack.c.l.b16 %v212
      %v256 = vunpack.c.l.b16 %v213
      %v257 = vunpack.c.l.b16 %v214
      %v258 = vunpack.c.l.b16 %v215
      %v259 = vunpack.c.l.b16 %v216
      %v260 = vunpack.c.l.b16 %v217
      %v261 = vunpack.c.l.b16 %v218
      %v262 = vunpack.c.l.b16 %v219
      %v263 = vunpack.c.l.b16 %v220
      %v264 = vunpack.c.l.b16 %v221
      %v265 = vunpack.c.l.b16 %v222
      %v266 = vunpack.c.l.b16 %v223
      %v267 = vunpack.c.l.b16 %v224
      %v268 = vunpack.c.l.b16 %v225
      %v269 = vunpack.c.l.b16 %v226
      %v270 = vpack.c.b16 %v255, %v254
      %v271 = vpack.c.b16 %v257, %v256
      %v272 = vpack.c.b16 %v259, %v258
      %v273 = vpack.c.b16 %v261, %v260
      %v274 = vpack.c.b16 %v263, %v262
      %v275 = vpack.c.b16 %v265, %v264
      %v276 = vpack.c.b16 %v267, %v266
      %v277 = vpack.c.b16 %v269, %v268
      %v282 = vunpack.c.l.b16 %v227
      %v283 = vunpack.c.l.b16 %v228
      %v284 = vunpack.c.l.b16 %v229
      %v285 = vunpack.c.l.b16 %v230
      %v286 = vpack.c.b16 %v283, %v282
      %v287 = vpack.c.b16 %v285, %v284
      %vm290 = vcmask 261120
      %v292 = vsel %vm290, %v270, 0
      %v295 = vsel %vm290, %v271, 0
      %v298 = vsel %vm290, %v272, 0
      %v301 = vsel %vm290, %v273, 0
      %v304 = vsel %vm290, %v274, 0
      %v307 = vsel %vm290, %v275, 0
      %v310 = vsel %vm290, %v276, 0
      %v313 = vsel %vm290, %v277, 0
      %315 = vmatprep.subr.bf16.mxu0 0
      %316 = vmatpush1.bf16.msra.mxu0 %v286
      %317 = vmatprep.subr.bf16.mxu0 0
      %318 = vmatpush1.bf16.msra.mxu0 %v287
      %319 = vmatprep.subr.bf16.mxu0 0
      %320 = vmatpush1.bf16.msra.mxu0 0
      %321 = vmatprep.subr.bf16.mxu0 0
      %322 = vmatpush1.bf16.msra.mxu0 0
      %323 = vmatprep.subr.bf16.mxu0 0
      %324 = vmatpush1.bf16.msra.mxu0 0
      %325 = vmatprep.subr.bf16.mxu0 0
      %326 = vmatpush1.bf16.msra.mxu0 0
      %327 = vmatprep.subr.bf16.mxu0 0
      %328 = vmatpush1.bf16.msra.mxu0 0
      %329 = vmatprep.subr.bf16.mxu0 0
      %330 = vmatpush1.bf16.msra.mxu0 0
      %331 = vmatprep.subr.bf16.mxu0 0
      %332 = vmatpush1.bf16.msra.mxu0 0
      %333 = vmatprep.subr.bf16.mxu0 0
      %334 = vmatpush1.bf16.msra.mxu0 0
      %335 = vmatprep.subr.bf16.mxu0 0
      %336 = vmatpush1.bf16.msra.mxu0 0
      %337 = vmatprep.subr.bf16.mxu0 0
      %338 = vmatpush1.bf16.msra.mxu0 0
      %339 = vmatprep.subr.bf16.mxu0 0
      %340 = vmatpush1.bf16.msra.mxu0 0
      %341 = vmatprep.subr.bf16.mxu0 0
      %342 = vmatpush1.bf16.msra.mxu0 0
      %343 = vmatprep.subr.bf16.mxu0 0
      %344 = vmatpush1.bf16.msra.mxu0 0
      %345 = vmatprep.subr.bf16.mxu0 0
      %346 = vmatpush1.bf16.msra.mxu0 0
      %347 = vmatprep.mubr.bf16.mxu0 0
      %348 = vmatmul.mubr.bf16.gmra.mrb[0].mxu0 %v292
      %v349 = vpop.f32.mrb[0].mxu0
      %v350 = vadd.f32 %v236, %v349
      %v351 = vpop.f32.mrb[0].mxu0
      %v352 = vpop.f32.mrb[0].mxu0
      %v353 = vadd.f32 %v236, %v352
      %v354 = vpop.f32.mrb[0].mxu0
      %355 = vmatprep.mubr.bf16.mxu0 0
      %356 = vmatmul.mubr.bf16.gmra.mrb[0].mxu0 %v295
      %v357 = vpop.f32.mrb[0].mxu0
      %v358 = vadd.f32 %v236, %v357
      %v359 = vpop.f32.mrb[0].mxu0
      %v360 = vpop.f32.mrb[0].mxu0
      %v361 = vadd.f32 %v236, %v360
      %v362 = vpop.f32.mrb[0].mxu0
      %363 = vmatprep.mubr.bf16.mxu0 0
      %364 = vmatmul.mubr.bf16.gmra.mrb[0].mxu0 %v298
      %v365 = vpop.f32.mrb[0].mxu0
      %v366 = vadd.f32 %v236, %v365
      %v367 = vpop.f32.mrb[0].mxu0
      %v368 = vpop.f32.mrb[0].mxu0
      %v369 = vadd.f32 %v236, %v368
      %v370 = vpop.f32.mrb[0].mxu0
      %371 = vmatprep.mubr.bf16.mxu0 0
      %372 = vmatmul.mubr.bf16.gmra.mrb[0].mxu0 %v301
      %v373 = vpop.f32.mrb[0].mxu0
      %v374 = vadd.f32 %v236, %v373
      %v375 = vpop.f32.mrb[0].mxu0
      %v376 = vpop.f32.mrb[0].mxu0
      %v377 = vadd.f32 %v236, %v376
      %v378 = vpop.f32.mrb[0].mxu0
      %379 = vmatprep.mubr.bf16.mxu0 0
      %380 = vmatmul.mubr.bf16.gmra.mrb[0].mxu0 %v304
      %v381 = vpop.f32.mrb[0].mxu0
      %v382 = vadd.f32 %v236, %v381
      %v383 = vpop.f32.mrb[0].mxu0
      %v384 = vpop.f32.mrb[0].mxu0
      %v385 = vadd.f32 %v236, %v384
      %v386 = vpop.f32.mrb[0].mxu0
      %387 = vmatprep.mubr.bf16.mxu0 0
      %388 = vmatmul.mubr.bf16.gmra.mrb[0].mxu0 %v307
      %v389 = vpop.f32.mrb[0].mxu0
      %v390 = vadd.f32 %v236, %v389
      %v391 = vpop.f32.mrb[0].mxu0
      %v392 = vpop.f32.mrb[0].mxu0
      %v393 = vadd.f32 %v236, %v392
      %v394 = vpop.f32.mrb[0].mxu0
      %395 = vmatprep.mubr.bf16.mxu0 0
      %396 = vmatmul.mubr.bf16.gmra.mrb[0].mxu0 %v310
      %v397 = vpop.f32.mrb[0].mxu0
      %v398 = vadd.f32 %v236, %v397
      %v399 = vpop.f32.mrb[0].mxu0
      %v400 = vpop.f32.mrb[0].mxu0
      %v401 = vadd.f32 %v236, %v400
      %v402 = vpop.f32.mrb[0].mxu0
      %403 = vmatprep.mubr.bf16.mxu0 0
      %404 = vmatmul.mubr.bf16.gmra.mrb[0].mxu0 %v313
      %v405 = vpop.f32.mrb[0].mxu0
      %v406 = vadd.f32 %v236, %v405
      %v407 = vpop.f32.mrb[0].mxu0
      %v408 = vpop.f32.mrb[0].mxu0
      %v409 = vadd.f32 %v236, %v408
      %v410 = vpop.f32.mrb[0].mxu0
      %411 = vdwg.mxu0
      %v412 = vpack.c.bf16 %v353, %v350
      %v413 = vpack.c.bf16 %v361, %v358
      %v414 = vpack.c.bf16 %v369, %v366
      %v415 = vpack.c.bf16 %v377, %v374
      %v416 = vpack.c.bf16 %v385, %v382
      %v417 = vpack.c.bf16 %v393, %v390
      %v418 = vpack.c.bf16 %v401, %v398
      %v419 = vpack.c.bf16 %v409, %v406
      %v428 = vunpack.c.l.b16 %v412
      %v429 = vunpack.c.h.b16 %v412
      %v430 = vunpack.c.l.b16 %v413
      %v431 = vunpack.c.h.b16 %v413
      %v432 = vunpack.c.l.b16 %v414
      %v433 = vunpack.c.h.b16 %v414
      %v434 = vunpack.c.l.b16 %v415
      %v435 = vunpack.c.h.b16 %v415
      %v436 = vunpack.c.l.b16 %v416
      %v437 = vunpack.c.h.b16 %v416
      %v438 = vunpack.c.l.b16 %v417
      %v439 = vunpack.c.h.b16 %v417
      %v440 = vunpack.c.l.b16 %v418
      %v441 = vunpack.c.h.b16 %v418
      %v442 = vunpack.c.l.b16 %v419
      %v443 = vunpack.c.h.b16 %v419
      %v444 = vpack.c.b16 %v428, %v428
      %v445 = vpack.c.b16 %v429, %v429
      %v446 = vpack.c.b16 %v430, %v430
      %v447 = vpack.c.b16 %v431, %v431
      %v448 = vpack.c.b16 %v432, %v432
      %v449 = vpack.c.b16 %v433, %v433
      %v450 = vpack.c.b16 %v434, %v434
      %v451 = vpack.c.b16 %v435, %v435
      %v452 = vpack.c.b16 %v436, %v436
      %v453 = vpack.c.b16 %v437, %v437
      %v454 = vpack.c.b16 %v438, %v438
      %v455 = vpack.c.b16 %v439, %v439
      %v456 = vpack.c.b16 %v440, %v440
      %v457 = vpack.c.b16 %v441, %v441
      %v458 = vpack.c.b16 %v442, %v442
      %v459 = vpack.c.b16 %v443, %v443
      %vm476 = vcmask 257024
      %477 = vst.msk [vmem:[%s208] sm:$0xf] %vm476, %v444
      %478 = vst.msk [vmem:[%s208 + $0x4] sm:$0xf] %vm476, %v445
      %479 = vst.msk [vmem:[%s208 + $0x8] sm:$0xf] %vm476, %v446
      %480 = vst.msk [vmem:[%s208 + $0xc] sm:$0xf] %vm476, %v447
      %481 = vst.msk [vmem:[%s208 + $0x10] sm:$0xf] %vm476, %v448
      %482 = vst.msk [vmem:[%s208 + $0x14] sm:$0xf] %vm476, %v449
      %483 = vst.msk [vmem:[%s208 + $0x18] sm:$0xf] %vm476, %v450
      %484 = vst.msk [vmem:[%s208 + $0x1c] sm:$0xf] %vm476, %v451
      %485 = vst.msk [vmem:[%s208 + $0x20] sm:$0xf] %vm476, %v452
      %486 = vst.msk [vmem:[%s208 + $0x24] sm:$0xf] %vm476, %v453
      %487 = vst.msk [vmem:[%s208 + $0x28] sm:$0xf] %vm476, %v454
      %488 = vst.msk [vmem:[%s208 + $0x2c] sm:$0xf] %vm476, %v455
      %489 = vst.msk [vmem:[%s208 + $0x30] sm:$0xf] %vm476, %v456
      %490 = vst.msk [vmem:[%s208 + $0x34] sm:$0xf] %vm476, %v457
      %491 = vst.msk [vmem:[%s208 + $0x38] sm:$0xf] %vm476, %v458
      %492 = vst.msk [vmem:[%s208 + $0x3c] sm:$0xf] %vm476, %v459
      %s493 = smul.u32 16, %s19
      %p494 = scmp.lt.s32.totalorder %s18, 1
      %s495 = scalar_select %p494, %s18, 1
      %p496 = scmp.lt.s32.totalorder %s493, 31
      %s497 = scalar_select %p496, %s493, 31
      %s498 = smul.addr %s495, 32
      %s499 = sadd.s32 %s497, %s498
      %s500 = smul.addr %s499, 4
      %s501 = scalar_lea.vmem %s3, %s500
      // Predicated region
      $region33: #{tpu_custom_call.1} parent=31 // pred_check
        %p502 = pneg %p116
      $region34: #{tpu_custom_call.1} parent=31 // pred_check_branch
        %504 = sbr.rel (%p502) target = $region36
      $region35: #{tpu_custom_call.1} parent=31 // pred_region
        %s505 = smul.u32 16, %s19
      $region36: #{tpu_custom_call.1} parent=31 // pred_fallthru
        _
    $region32: #{tpu_custom_call.1} parent=5 // pred_fallthru
      _
    %p506 = scmp.le.s32.totalorder 2, %s9
    // Predicated region
    $region37: #{tpu_custom_call.1} parent=5 // pred_check
      %p507 = pneg %p506
    $region38: #{tpu_custom_call.1} parent=5 // pred_check_branch
      %509 = sbr.rel (%p507) target = $region40
    $region39: #{tpu_custom_call.1} parent=5 // pred_region
      %s510 = ssub.s32 %s9, 2
      // Predicated region
      $region41: #{tpu_custom_call.1} parent=39 // pred_check
        %p511 = pneg %p122
      $region42: #{tpu_custom_call.1} parent=39 // pred_check_branch
        %513 = sbr.rel (%p511) target = $region44
      $region43: #{tpu_custom_call.1} parent=39 // pred_region
        %s514 = smul.u32 16, %s21
        %p515 = scmp.lt.s32.totalorder %s20, 1
        %s516 = scalar_select %p515, %s20, 1
        %p517 = scmp.lt.s32.totalorder %s514, 31
        %s518 = scalar_select %p517, %s514, 31
        %s519 = smul.addr %s516, 32
        %s520 = sadd.s32 %s518, %s519
        %s521 = smul.addr %s520, 4
        %s522 = scalar_lea.vmem %s3, %s521
      $region44: #{tpu_custom_call.1} parent=39 // pred_fallthru
        _
    $region40: #{tpu_custom_call.1} parent=5 // pred_fallthru
      _
  $region6: #{tpu_custom_call.1} parent=0 // loop_footer
    %s13 = sadd.s32 1, %s9
  $region7: #{tpu_custom_call.1} parent=0 // loop_footer_branch
    %8 = sbr.rel target = $region3
  $region8: #{tpu_custom_call.1} parent=0 // loop_exit
    _

</llo_original>
